<compile_context>
chip_gen: v5e
topology: v5e:2x2
jax: 0.10.0
libtpu: 0.0.40
codegen_flags: <defaults>
</compile_context>

<pallas_src>
import functools

import jax
import jax.numpy as jnp
from jax.experimental import pallas as pl
from jax.experimental.pallas import tpu as pltpu

_LANE = 128  # vreg lane width
_SUB = 8     # f32 sublane count


def _round_up(n, m):
    return ((n + m - 1) // m) * m


def _rnn_kernel(n_layers, t_chunk, x_ref, *args):
    """One (batch_block, time_chunk) grid step of a multi-layer tanh RNN.

    args: [w_cat_l, b_l] * n_layers, fc_w, fc_b, out_ref, h_ref
      w_cat_l : (in_l_pad + hidden_pad, hidden_pad)   fused [W_ih.T ; W_hh.T]
      b_l     : (1, hidden_pad)                        b_ih + b_hh
      fc_w    : (hidden_pad, out_pad)                  fc.weight.T
      fc_b    : (1, out_pad)
      out_ref : (bs_blk, out_pad)
      h_ref   : (n_layers, bs_blk, hidden_pad) f32 VMEM scratch (carried over time)
    """
    n_w = 2 * n_layers + 2
    w_refs = args[:n_w]
    out_ref = args[n_w]
    h_ref = args[n_w + 1]

    t_blk = pl.program_id(1)

    # h0 = zeros, matching torch.zeros(n_layers, bs, hidden_dim)
    @pl.when(t_blk == 0)
    def _():
        h_ref[...] = jnp.zeros(h_ref.shape, h_ref.dtype)

    # Hoist weight / bias loads out of the time loop (loaded once per chunk).
    w_cats = [w_refs[2 * l][...] for l in range(n_layers)]
    biases = [w_refs[2 * l + 1][...] for l in range(n_layers)]

    @pl.loop(0, t_chunk)
    def _(t):
        inp = x_ref[t]                                   # (bs_blk, in_pad)
        for l in range(n_layers):                        # static unroll over layers
            h_prev = h_ref[l]                            # (bs_blk, hidden_pad)
            # Single fused MXU matmul: [x_t, h_{t-1}] @ [W_ih.T ; W_hh.T]
            cat = jnp.concatenate([inp, h_prev], axis=-1)
            h_new = jnp.tanh(
                jnp.dot(cat, w_cats[l], preferred_element_type=jnp.float32)
                + biases[l])
            h_ref[l] = h_new
            inp = h_new

    # fc applied to the last timestep of the top layer: out[:, -1, :] == fc(rnn_out[:, -1, :])
    @pl.when(t_blk == pl.num_programs(1) - 1)
    def _():
        fc_w = w_refs[2 * n_layers][...]                 # (hidden_pad, out_pad)
        fc_b = w_refs[2 * n_layers + 1][...]             # (1, out_pad)
        out_ref[...] = (
            jnp.dot(h_ref[n_layers - 1], fc_w, preferred_element_type=jnp.float32)
            + fc_b
        ).astype(out_ref.dtype)


def rnn_forward(x, params, hidden_dim, output_size, n_layers):
    """Pallas TPU forward matching the PyTorch RNN module (batch_first input)."""
    bs, seq, input_size = x.shape

    # ---- (8, 128)-aligned, MXU-friendly padded dims -------------------------
    hid_p = _round_up(hidden_dim, _LANE)
    in_p = _round_up(input_size, _LANE)
    out_p = _round_up(output_size, _LANE)    # lane-dense final store
    bs_p = _round_up(bs, _SUB)

    # Time chunking: x is streamed chunk-by-chunk, h carried in VMEM scratch.
    t_chunk = next(c for c in (64, 32, 16, 8, 4, 2, 1) if seq % c == 0)
    n_tblk = seq // t_chunk

    # Split the batch across TensorCores when there is enough of it (v7x megacore).
    if bs_p >= 2 * _SUB and bs_p % (2 * _SUB) == 0:
        bs_blk = bs_p // 2
    else:
        bs_blk = bs_p
    n_bblk = bs_p // bs_blk

    # Time-major, zero-padded input: (seq, bs_p, in_p)
    x_t = jnp.transpose(x, (1, 0, 2)).astype(jnp.float32)
    x_t = jnp.pad(x_t, ((0, 0), (0, bs_p - bs), (0, in_p - input_size)))

    # ---- weight packing: fuse ih/hh matmuls and pre-add the two biases ------
    flat = []
    for l in range(n_layers):
        w_ih, w_hh, b_ih, b_hh = params["rnn"][l]
        in_l = w_ih.shape[1]
        in_l_p = in_p if l == 0 else hid_p
        w_cat = jnp.zeros((in_l_p + hid_p, hid_p), jnp.float32)
        w_cat = w_cat.at[:in_l, :hidden_dim].set(w_ih.T.astype(jnp.float32))
        w_cat = w_cat.at[in_l_p:in_l_p + hidden_dim, :hidden_dim].set(
            w_hh.T.astype(jnp.float32))
        b = jnp.zeros((1, hid_p), jnp.float32)
        b = b.at[0, :hidden_dim].set((b_ih + b_hh).astype(jnp.float32))
        flat += [w_cat, b]
    fc_w = jnp.zeros((hid_p, out_p), jnp.float32)
    fc_w = fc_w.at[:hidden_dim, :output_size].set(params["fc_w"].T.astype(jnp.float32))
    fc_b = jnp.zeros((1, out_p), jnp.float32)
    fc_b = fc_b.at[0, :output_size].set(params["fc_b"].astype(jnp.float32))
    flat += [fc_w, fc_b]

    grid = (n_bblk, n_tblk)
    x_spec = pl.BlockSpec((t_chunk, bs_blk, in_p), lambda b, t: (t, b, 0))
    w_specs = [pl.BlockSpec(w.shape, lambda b, t: (0, 0)) for w in flat]  # resident
    out_spec = pl.BlockSpec((bs_blk, out_p), lambda b, t: (b, 0))

    kernel = functools.partial(_rnn_kernel, n_layers, t_chunk)
    out = pl.pallas_call(
        kernel,
        out_shape=jax.ShapeDtypeStruct((bs_p, out_p), jnp.float32),
        grid_spec=pltpu.PrefetchScalarGridSpec(
            num_scalar_prefetch=0,
            grid=grid,
            in_specs=[x_spec] + w_specs,
            out_specs=out_spec,
            scratch_shapes=[pltpu.VMEM((n_layers, bs_blk, hid_p), jnp.float32)],
        ),
        compiler_params=pltpu.CompilerParams(
            dimension_semantics=("parallel", "arbitrary")),
    )(x_t, *flat)
    return out[:bs, :output_size]


def rnn_reference(x, params, n_layers):
    # Pure-JAX replica of the PyTorch forward.
    bs, seq, _ = x.shape
    inp_seq = x
    for l in range(n_layers):
        w_ih, w_hh, b_ih, b_hh = params["rnn"][l]
        h_l = jnp.zeros((bs, w_hh.shape[0]), jnp.float32)
        outs = []
        for t in range(seq):
            h_l = jnp.tanh(inp_seq[:, t, :] @ w_ih.T + b_ih + h_l @ w_hh.T + b_hh)
            outs.append(h_l)
        inp_seq = jnp.stack(outs, axis=1)
    out = inp_seq @ params["fc_w"].T + params["fc_b"]
    return out[:, -1, :]


if __name__ == "__main__":
    input_size, hidden_dim, output_size, n_layers = 16, 32, 4, 2
    bs, seq = 2, 8

    key = jax.random.PRNGKey(0)
    keys = jax.random.split(key, 4 * n_layers + 3)
    k = 1.0 / float(jnp.sqrt(hidden_dim))

    params = {"rnn": []}
    ki = 0
    for l in range(n_layers):
        in_l = input_size if l == 0 else hidden_dim
        w_ih = jax.random.uniform(keys[ki], (hidden_dim, in_l), minval=-k, maxval=k); ki += 1
        w_hh = jax.random.uniform(keys[ki], (hidden_dim, hidden_dim), minval=-k, maxval=k); ki += 1
        b_ih = jax.random.uniform(keys[ki], (hidden_dim,), minval=-k, maxval=k); ki += 1
        b_hh = jax.random.uniform(keys[ki], (hidden_dim,), minval=-k, maxval=k); ki += 1
        params["rnn"].append((w_ih, w_hh, b_ih, b_hh))
    params["fc_w"] = jax.random.uniform(keys[ki], (output_size, hidden_dim), minval=-k, maxval=k); ki += 1
    params["fc_b"] = jax.random.uniform(keys[ki], (output_size,), minval=-k, maxval=k); ki += 1

    x = jax.random.normal(keys[ki], (bs, seq, input_size), dtype=jnp.float32)

    out = jax.block_until_ready(rnn_forward(x, params, hidden_dim, output_size, n_layers))
    ref = rnn_reference(x, params, n_layers)
    assert out.shape == (bs, output_size)
    assert jnp.allclose(out, ref, atol=2e-5, rtol=1e-4), (out, ref)
    print("KERNEL_OK")
</pallas_src>

<mosaic_0001>
module attributes {stable_mosaic.version = 11 : i64} {
  func.func @_rnn_kernel(%arg0: i32, %arg1: i32, %arg2: memref<8x8x128xf32, #tpu.memory_space<vmem>>, %arg3: memref<256x128xf32, #tpu.memory_space<vmem>>, %arg4: memref<1x128xf32, #tpu.memory_space<vmem>>, %arg5: memref<256x128xf32, #tpu.memory_space<vmem>>, %arg6: memref<1x128xf32, #tpu.memory_space<vmem>>, %arg7: memref<128x128xf32, #tpu.memory_space<vmem>>, %arg8: memref<1x128xf32, #tpu.memory_space<vmem>>, %arg9: memref<8x128xf32, #tpu.memory_space<vmem>>, %arg10: memref<2x8x128xf32, #tpu.memory_space<vmem>>) attributes {dimension_semantics = [#tpu.dimension_semantics<parallel>, #tpu.dimension_semantics<arbitrary>], iteration_bounds = array<i64: 1, 1>, scalar_prefetch = 0 : i64, scratch_operands = 1 : i64, tpu.core_type = #tpu.core_type<tc>, window_params = [{transform_indices = @transform_0, window_bounds = array<i64: 8, 8, 128>}, {pipeline_mode = #tpu.pipeline_mode<synchronous>, transform_indices = @transform_1, window_bounds = array<i64: 256, 128>}, {pipeline_mode = #tpu.pipeline_mode<synchronous>, transform_indices = @transform_2, window_bounds = array<i64: 1, 128>}, {pipeline_mode = #tpu.pipeline_mode<synchronous>, transform_indices = @transform_3, window_bounds = array<i64: 256, 128>}, {pipeline_mode = #tpu.pipeline_mode<synchronous>, transform_indices = @transform_4, window_bounds = array<i64: 1, 128>}, {pipeline_mode = #tpu.pipeline_mode<synchronous>, transform_indices = @transform_5, window_bounds = array<i64: 128, 128>}, {pipeline_mode = #tpu.pipeline_mode<synchronous>, transform_indices = @transform_6, window_bounds = array<i64: 1, 128>}, {transform_indices = @transform_7, window_bounds = array<i64: 8, 128>}]} {
    %c0_i32 = arith.constant 0 : i32
    %0 = arith.cmpi eq, %arg1, %c0_i32 : i32
    %1 = arith.extui %0 : i1 to i32
    %c0_i32_0 = arith.constant 0 : i32
    %2 = arith.cmpi ne, %1, %c0_i32_0 : i32
    scf.if %2 {
      %cst = arith.constant 0.000000e+00 : f32
      %11 = vector.broadcast %cst : f32 to vector<2x8x128xf32>
      %c0_12 = arith.constant 0 : index
      %c0_13 = arith.constant 0 : index
      %c0_14 = arith.constant 0 : index
      %12 = vector.load %arg10[%c0_12, %c0_13, %c0_14] : memref<2x8x128xf32, #tpu.memory_space<vmem>>, vector<2x8x128xf32>
      tpu.vector_store %arg10[%c0_12, %c0_13, %c0_14], %11 {strides = array<i32>} : memref<2x8x128xf32, #tpu.memory_space<vmem>>, vector<2x8x128xf32>,
    } else {
    }
    %c0 = arith.constant 0 : index
    %c0_1 = arith.constant 0 : index
    %3 = vector.load %arg3[%c0, %c0_1] : memref<256x128xf32, #tpu.memory_space<vmem>>, vector<256x128xf32>
    %c0_2 = arith.constant 0 : index
    %c0_3 = arith.constant 0 : index
    %4 = vector.load %arg5[%c0_2, %c0_3] : memref<256x128xf32, #tpu.memory_space<vmem>>, vector<256x128xf32>
    %c0_4 = arith.constant 0 : index
    %c0_5 = arith.constant 0 : index
    %5 = vector.load %arg4[%c0_4, %c0_5] : memref<1x128xf32, #tpu.memory_space<vmem>>, vector<1x128xf32>
    %c0_6 = arith.constant 0 : index
    %c0_7 = arith.constant 0 : index
    %6 = vector.load %arg6[%c0_6, %c0_7] : memref<1x128xf32, #tpu.memory_space<vmem>>, vector<1x128xf32>
    %c0_i32_8 = arith.constant 0 : i32
    %c8_i32 = arith.constant 8 : i32
    %7 = arith.addi %c0_i32_8, %c8_i32 : i32
    %c1_i32 = arith.constant 1 : i32
    scf.for %arg11 = %c0_i32_8 to %7 step %c1_i32  : i32 {
      %c1_i32_12 = arith.constant 1 : i32
      %11 = arith.muli %arg11, %c1_i32_12 : i32
      %c0_i32_13 = arith.constant 0 : i32
      %12 = arith.addi %c0_i32_13, %11 : i32
      %13 = arith.index_cast %12 : i32 to index
      %c0_14 = arith.constant 0 : index
      %c0_15 = arith.constant 0 : index
      %14 = vector.load %arg2[%13, %c0_14, %c0_15] : memref<8x8x128xf32, #tpu.memory_space<vmem>>, vector<1x8x128xf32>
      %15 = vector.shape_cast %14 : vector<1x8x128xf32> to vector<8x128xf32>
      %c0_16 = arith.constant 0 : index
      %c0_17 = arith.constant 0 : index
      %c0_18 = arith.constant 0 : index
      %16 = vector.load %arg10[%c0_16, %c0_17, %c0_18] : memref<2x8x128xf32, #tpu.memory_space<vmem>>, vector<1x8x128xf32>
      %17 = vector.shape_cast %16 : vector<1x8x128xf32> to vector<8x128xf32>
      %18 = tpu.concatenate %15, %17 in 1 : vector<8x128xf32>, vector<8x128xf32> -> vector<8x256xf32>
      %cst = arith.constant dense<0.000000e+00> : vector<8x128xf32>
      %19 = tpu.matmul %18, %3, %cst {dimension_numbers = #tpu.dot_dimension_numbers<[1], [0], [0], [1], [0, 0, 1, 1], [], []>} : vector<8x256xf32>, vector<256x128xf32>, vector<8x128xf32> -> vector<8x128xf32>
      %20 = vector.broadcast %5 : vector<1x128xf32> to vector<8x128xf32>
      %21 = arith.addf %19, %20 : vector<8x128xf32>
      %22 = math.tanh %21 : vector<8x128xf32>
      %c0_19 = arith.constant 0 : index
      %c0_20 = arith.constant 0 : index
      %c0_21 = arith.constant 0 : index
      %23 = vector.load %arg10[%c0_19, %c0_20, %c0_21] : memref<2x8x128xf32, #tpu.memory_space<vmem>>, vector<1x8x128xf32>
      %24 = vector.shape_cast %23 : vector<1x8x128xf32> to vector<8x128xf32>
      %25 = vector.shape_cast %22 : vector<8x128xf32> to vector<1x8x128xf32>
      tpu.vector_store %arg10[%c0_19, %c0_20, %c0_21], %25 {strides = array<i32>} : memref<2x8x128xf32, #tpu.memory_space<vmem>>, vector<1x8x128xf32>,
      %c1 = arith.constant 1 : index
      %c0_22 = arith.constant 0 : index
      %c0_23 = arith.constant 0 : index
      %26 = vector.load %arg10[%c1, %c0_22, %c0_23] : memref<2x8x128xf32, #tpu.memory_space<vmem>>, vector<1x8x128xf32>
      %27 = vector.shape_cast %26 : vector<1x8x128xf32> to vector<8x128xf32>
      %28 = tpu.concatenate %22, %27 in 1 : vector<8x128xf32>, vector<8x128xf32> -> vector<8x256xf32>
      %cst_24 = arith.constant dense<0.000000e+00> : vector<8x128xf32>
      %29 = tpu.matmul %28, %4, %cst_24 {dimension_numbers = #tpu.dot_dimension_numbers<[1], [0], [0], [1], [0, 0, 1, 1], [], []>} : vector<8x256xf32>, vector<256x128xf32>, vector<8x128xf32> -> vector<8x128xf32>
      %30 = vector.broadcast %6 : vector<1x128xf32> to vector<8x128xf32>
      %31 = arith.addf %29, %30 : vector<8x128xf32>
      %32 = math.tanh %31 : vector<8x128xf32>
      %c1_25 = arith.constant 1 : index
      %c0_26 = arith.constant 0 : index
      %c0_27 = arith.constant 0 : index
      %33 = vector.load %arg10[%c1_25, %c0_26, %c0_27] : memref<2x8x128xf32, #tpu.memory_space<vmem>>, vector<1x8x128xf32>
      %34 = vector.shape_cast %33 : vector<1x8x128xf32> to vector<8x128xf32>
      %35 = vector.shape_cast %32 : vector<8x128xf32> to vector<1x8x128xf32>
      tpu.vector_store %arg10[%c1_25, %c0_26, %c0_27], %35 {strides = array<i32>} : memref<2x8x128xf32, #tpu.memory_space<vmem>>, vector<1x8x128xf32>,
    }
    %c8_i32_9 = arith.constant 8 : i32
    %c0_i32_10 = arith.constant 0 : i32
    %8 = arith.cmpi eq, %arg1, %c0_i32_10 : i32
    %9 = arith.extui %8 : i1 to i32
    %c0_i32_11 = arith.constant 0 : i32
    %10 = arith.cmpi ne, %9, %c0_i32_11 : i32
    scf.if %10 {
      %c0_12 = arith.constant 0 : index
      %c0_13 = arith.constant 0 : index
      %11 = vector.load %arg7[%c0_12, %c0_13] : memref<128x128xf32, #tpu.memory_space<vmem>>, vector<128x128xf32>
      %c0_14 = arith.constant 0 : index
      %c0_15 = arith.constant 0 : index
      %12 = vector.load %arg8[%c0_14, %c0_15] : memref<1x128xf32, #tpu.memory_space<vmem>>, vector<1x128xf32>
      %c1 = arith.constant 1 : index
      %c0_16 = arith.constant 0 : index
      %c0_17 = arith.constant 0 : index
      %13 = vector.load %arg10[%c1, %c0_16, %c0_17] : memref<2x8x128xf32, #tpu.memory_space<vmem>>, vector<1x8x128xf32>
      %14 = vector.shape_cast %13 : vector<1x8x128xf32> to vector<8x128xf32>
      %cst = arith.constant dense<0.000000e+00> : vector<8x128xf32>
      %15 = tpu.matmul %14, %11, %cst {dimension_numbers = #tpu.dot_dimension_numbers<[1], [0], [0], [1], [0, 0, 1, 1], [], []>} : vector<8x128xf32>, vector<128x128xf32>, vector<8x128xf32> -> vector<8x128xf32>
      %16 = vector.broadcast %12 : vector<1x128xf32> to vector<8x128xf32>
      %17 = arith.addf %15, %16 : vector<8x128xf32>
      %c0_18 = arith.constant 0 : index
      %c0_19 = arith.constant 0 : index
      %18 = vector.load %arg9[%c0_18, %c0_19] : memref<8x128xf32, #tpu.memory_space<vmem>>, vector<8x128xf32>
      tpu.vector_store %arg9[%c0_18, %c0_19], %17 {strides = array<i32>} : memref<8x128xf32, #tpu.memory_space<vmem>>, vector<8x128xf32>,
    } else {
    }
    return
  }
  func.func @transform_0(%arg0: i32, %arg1: i32) -> (i32, i32, i32) {
    %c0_i32 = arith.constant 0 : i32
    %c0_i32_0 = arith.constant 0 : i32
    return %arg1, %arg0, %c0_i32 : i32, i32, i32
  }
  func.func @transform_1(%arg0: i32, %arg1: i32) -> (i32, i32) {
    %c0_i32 = arith.constant 0 : i32
    %c0_i32_0 = arith.constant 0 : i32
    %c0_i32_1 = arith.constant 0 : i32
    return %c0_i32, %c0_i32_0 : i32, i32
  }
  func.func @transform_2(%arg0: i32, %arg1: i32) -> (i32, i32) {
    %c0_i32 = arith.constant 0 : i32
    %c0_i32_0 = arith.constant 0 : i32
    %c0_i32_1 = arith.constant 0 : i32
    return %c0_i32, %c0_i32_0 : i32, i32
  }
  func.func @transform_3(%arg0: i32, %arg1: i32) -> (i32, i32) {
    %c0_i32 = arith.constant 0 : i32
    %c0_i32_0 = arith.constant 0 : i32
    %c0_i32_1 = arith.constant 0 : i32
    return %c0_i32, %c0_i32_0 : i32, i32
  }
  func.func @transform_4(%arg0: i32, %arg1: i32) -> (i32, i32) {
    %c0_i32 = arith.constant 0 : i32
    %c0_i32_0 = arith.constant 0 : i32
    %c0_i32_1 = arith.constant 0 : i32
    return %c0_i32, %c0_i32_0 : i32, i32
  }
  func.func @transform_5(%arg0: i32, %arg1: i32) -> (i32, i32) {
    %c0_i32 = arith.constant 0 : i32
    %c0_i32_0 = arith.constant 0 : i32
    %c0_i32_1 = arith.constant 0 : i32
    return %c0_i32, %c0_i32_0 : i32, i32
  }
  func.func @transform_6(%arg0: i32, %arg1: i32) -> (i32, i32) {
    %c0_i32 = arith.constant 0 : i32
    %c0_i32_0 = arith.constant 0 : i32
    %c0_i32_1 = arith.constant 0 : i32
    return %c0_i32, %c0_i32_0 : i32, i32
  }
  func.func @transform_7(%arg0: i32, %arg1: i32) -> (i32, i32) {
    %c0_i32 = arith.constant 0 : i32
    %c0_i32_0 = arith.constant 0 : i32
    return %arg0, %c0_i32 : i32, i32
  }
}

</mosaic_0001>

<llo_original>
// kernel: tpu_custom_call.1
$region0: #{tpu_custom_call.1}
  #allocation0 [shape = 'u32[]', space=smem, size = 0x4, offset = 0x4, fixed_abs, tag = 'smem constant byte address 0x4 - core index']
  #allocation1 [shape = 'u32[72,128]{1,0:T(1,128)}', space=vmem, size = 0x9000, scoped, tag = 'internal scratch']
  #allocation2 [shape = 'f32[2,8,128]{2,1,0:T(8,128)}', space=vmem, size = 0x2000, scoped, tag = 'scratch operand']
  %s0 = inlined_call_operand.hbm [shape: f32[8,8,128], index: 0, kind: input, shape index: {}]
  %s1 = inlined_call_operand.hbm [shape: f32[256,128], index: 1, kind: input, shape index: {}]
  %s2 = inlined_call_operand.vmem [shape: f32[1,128], index: 2, kind: input, shape index: {}]
  %s3 = inlined_call_operand.hbm [shape: f32[256,128], index: 3, kind: input, shape index: {}]
  %s4 = inlined_call_operand.vmem [shape: f32[1,128], index: 4, kind: input, shape index: {}]
  %s5 = inlined_call_operand.hbm [shape: f32[128,128], index: 5, kind: input, shape index: {}]
  %s6 = inlined_call_operand.vmem [shape: f32[1,128], index: 6, kind: input, shape index: {}]
  %s7 = inlined_call_operand.hbm [shape: f32[8,128], index: 7, kind: output, shape index: {}]
  %s8 = sld [smem:[#allocation0]]
  $region69: #{tpu_custom_call.1} parent=0
    _
  %s10 = ssub.s32 1, %s8
  %s11 = scalar_select 0, %s10, %s8
  $region1: #{tpu_custom_call.1} parent=0
    #allocation3 [shape = 'u8[32768]{0}', space=vmem, size = 0x8000, scoped, tag = 'input window, operand 0, single buffered']
    #allocation4 [shape = 's32[1]{0}', space=sflag, size = 0x4, scoped, tag = 'scoped memory for tpu_custom_call.1']
    #allocation5 [shape = 's32[1]{0}', space=sflag, size = 0x4, scoped, tag = 'scoped memory for tpu_custom_call.1']
    #allocation6 [shape = 'u8[131072]{0}', space=vmem, size = 0x20000, scoped, tag = 'input window, operand 1, single buffered']
    #allocation7 [shape = 's32[1]{0}', space=sflag, size = 0x4, scoped, tag = 'scoped memory for tpu_custom_call.1']
    #allocation8 [shape = 'u8[131072]{0}', space=vmem, size = 0x20000, scoped, tag = 'input window, operand 3, single buffered']
    #allocation9 [shape = 'u8[65536]{0}', space=vmem, size = 0x10000, scoped, tag = 'input window, operand 5, single buffered']
    #allocation10 [shape = 's32[1]{0}', space=sflag, size = 0x4, scoped, tag = 'scoped memory for tpu_custom_call.1']
    #allocation11 [shape = 'u8[4096]{0}', space=vmem, size = 0x1000, scoped, tag = 'output window, operand 0, single buffered']
    %12 = vsyncpa [#allocation4], 0
    %13 = vsyncpa [#allocation7], 0
    %14 = vsyncpa [#allocation10], 0
    %15 = vsyncpa [#allocation5], 0
    // Predicated region
    $region2: #{tpu_custom_call.1} parent=1 // pred_check
      _
    $region3: #{tpu_custom_call.1} parent=1 // pred_check_branch
      %17 = sbr.rel (0) target = $region5
    $region4: #{tpu_custom_call.1} parent=1 // pred_region
      %19 = vsyncadd [#allocation4], 0
      %s20 = sshll.u32 %s0, 4
      %s21 = int_to_ptr.hbm [resolvable:$true] %s20
      %s22 = sshll.u32 [#allocation3], 4
      %s23 = int_to_ptr.vmem [resolvable:$true] %s22
      %28 = dma.hbm_to_vmem [thread:$0]  %s21, 1024, %s23, [#allocation4], 128, 128, 8
    $region5: #{tpu_custom_call.1} parent=1 // pred_fallthru
      _
    // Predicated region
    $region6: #{tpu_custom_call.1} parent=1 // pred_check
      _
    $region7: #{tpu_custom_call.1} parent=1 // pred_check_branch
      %30 = sbr.rel (0) target = $region9
    $region8: #{tpu_custom_call.1} parent=1 // pred_region
      %32 = vsyncadd [#allocation7], 0
      %s33 = sshll.u32 %s1, 4
      %s34 = int_to_ptr.hbm [resolvable:$true] %s33
      %s35 = sshll.u32 [#allocation6], 4
      %s36 = int_to_ptr.vmem [resolvable:$true] %s35
      %41 = dma.hbm_to_vmem [thread:$0]  %s34, 4096, %s36, [#allocation7], 128, 128, 8
    $region9: #{tpu_custom_call.1} parent=1 // pred_fallthru
      _
    // Predicated region
    $region10: #{tpu_custom_call.1} parent=1 // pred_check
      _
    $region11: #{tpu_custom_call.1} parent=1 // pred_check_branch
      %43 = sbr.rel (0) target = $region13
    $region12: #{tpu_custom_call.1} parent=1 // pred_region
      _
    $region13: #{tpu_custom_call.1} parent=1 // pred_fallthru
      _
    // Predicated region
    $region14: #{tpu_custom_call.1} parent=1 // pred_check
      _
    $region15: #{tpu_custom_call.1} parent=1 // pred_check_branch
      %45 = sbr.rel (0) target = $region17
    $region16: #{tpu_custom_call.1} parent=1 // pred_region
      %47 = vsyncadd [#allocation7], 0
      %s48 = sshll.u32 %s3, 4
      %s49 = int_to_ptr.hbm [resolvable:$true] %s48
      %s50 = sshll.u32 [#allocation8], 4
      %s51 = int_to_ptr.vmem [resolvable:$true] %s50
      %56 = dma.hbm_to_vmem [thread:$0]  %s49, 4096, %s51, [#allocation7], 128, 128, 8
    $region17: #{tpu_custom_call.1} parent=1 // pred_fallthru
      _
    // Predicated region
    $region18: #{tpu_custom_call.1} parent=1 // pred_check
      _
    $region19: #{tpu_custom_call.1} parent=1 // pred_check_branch
      %58 = sbr.rel (0) target = $region21
    $region20: #{tpu_custom_call.1} parent=1 // pred_region
      _
    $region21: #{tpu_custom_call.1} parent=1 // pred_fallthru
      _
    // Predicated region
    $region22: #{tpu_custom_call.1} parent=1 // pred_check
      _
    $region23: #{tpu_custom_call.1} parent=1 // pred_check_branch
      %60 = sbr.rel (0) target = $region25
    $region24: #{tpu_custom_call.1} parent=1 // pred_region
      %62 = vsyncadd [#allocation10], 0
      %s63 = sshll.u32 %s5, 4
      %s64 = int_to_ptr.hbm [resolvable:$true] %s63
      %s65 = sshll.u32 [#allocation9], 4
      %s66 = int_to_ptr.vmem [resolvable:$true] %s65
      %71 = dma.hbm_to_vmem [thread:$0]  %s64, 2048, %s66, [#allocation10], 128, 128, 8
    $region25: #{tpu_custom_call.1} parent=1 // pred_fallthru
      _
    // Predicated region
    $region26: #{tpu_custom_call.1} parent=1 // pred_check
      _
    $region27: #{tpu_custom_call.1} parent=1 // pred_check_branch
      %73 = sbr.rel (0) target = $region29
    $region28: #{tpu_custom_call.1} parent=1 // pred_region
      _
    $region29: #{tpu_custom_call.1} parent=1 // pred_fallthru
      _
    // Predicated region
    $region30: #{tpu_custom_call.1} parent=1 // pred_check
      _
    $region31: #{tpu_custom_call.1} parent=1 // pred_check_branch
      %75 = sbr.rel (0) target = $region33
    $region32: #{tpu_custom_call.1} parent=1 // pred_region
      %77 = dma.done [#allocation4], 1024
    $region33: #{tpu_custom_call.1} parent=1 // pred_fallthru
      _
    // Predicated region
    $region34: #{tpu_custom_call.1} parent=1 // pred_check
      _
    $region35: #{tpu_custom_call.1} parent=1 // pred_check_branch
      %79 = sbr.rel (0) target = $region37
    $region36: #{tpu_custom_call.1} parent=1 // pred_region
      %81 = dma.done [#allocation7], 4096
    $region37: #{tpu_custom_call.1} parent=1 // pred_fallthru
      _
    // Predicated region
    $region38: #{tpu_custom_call.1} parent=1 // pred_check
      _
    $region39: #{tpu_custom_call.1} parent=1 // pred_check_branch
      %83 = sbr.rel (0) target = $region41
    $region40: #{tpu_custom_call.1} parent=1 // pred_region
      %85 = dma.done [#allocation7], 4096
    $region41: #{tpu_custom_call.1} parent=1 // pred_fallthru
      _
    // Predicated region
    $region42: #{tpu_custom_call.1} parent=1 // pred_check
      _
    $region43: #{tpu_custom_call.1} parent=1 // pred_check_branch
      %87 = sbr.rel (0) target = $region45
    $region44: #{tpu_custom_call.1} parent=1 // pred_region
      %89 = dma.done [#allocation10], 2048
    $region45: #{tpu_custom_call.1} parent=1 // pred_fallthru
      _
    %p90 = scmp.eq.s32.totalorder 0, 0
    // Predicated region
    $region46: #{tpu_custom_call.1} parent=1 // pred_check
      %p91 = pneg %p90
    $region47: #{tpu_custom_call.1} parent=1 // pred_check_branch
      %93 = sbr.rel (%p91) target = $region49
    $region48: #{tpu_custom_call.1} parent=1 // pred_region
      %94 = vst [vmem:[#allocation2] sm:$0xff] 0.0
      %95 = vst [vmem:[#allocation2 + $0x8] sm:$0xff] 0.0
    $region49: #{tpu_custom_call.1} parent=1 // pred_fallthru
      _
    %v96 = vld [vmem:[#allocation6] sm:$0xff]
    %v97 = vld [vmem:[#allocation6 + $0x8] sm:$0xff]
    %v98 = vld [vmem:[#allocation6 + $0x10] sm:$0xff]
    %v99 = vld [vmem:[#allocation6 + $0x18] sm:$0xff]
    %v100 = vld [vmem:[#allocation6 + $0x20] sm:$0xff]
    %v101 = vld [vmem:[#allocation6 + $0x28] sm:$0xff]
    %v102 = vld [vmem:[#allocation6 + $0x30] sm:$0xff]
    %v103 = vld [vmem:[#allocation6 + $0x38] sm:$0xff]
    %v104 = vld [vmem:[#allocation6 + $0x40] sm:$0xff]
    %v105 = vld [vmem:[#allocation6 + $0x48] sm:$0xff]
    %v106 = vld [vmem:[#allocation6 + $0x50] sm:$0xff]
    %v107 = vld [vmem:[#allocation6 + $0x58] sm:$0xff]
    %v108 = vld [vmem:[#allocation6 + $0x60] sm:$0xff]
    %v109 = vld [vmem:[#allocation6 + $0x68] sm:$0xff]
    %v110 = vld [vmem:[#allocation6 + $0x70] sm:$0xff]
    %v111 = vld [vmem:[#allocation6 + $0x78] sm:$0xff]
    %v112 = vld [vmem:[#allocation6 + $0x80] sm:$0xff]
    %v113 = vld [vmem:[#allocation6 + $0x88] sm:$0xff]
    %v114 = vld [vmem:[#allocation6 + $0x90] sm:$0xff]
    %v115 = vld [vmem:[#allocation6 + $0x98] sm:$0xff]
    %v116 = vld [vmem:[#allocation6 + $0xa0] sm:$0xff]
    %v117 = vld [vmem:[#allocation6 + $0xa8] sm:$0xff]
    %v118 = vld [vmem:[#allocation6 + $0xb0] sm:$0xff]
    %v119 = vld [vmem:[#allocation6 + $0xb8] sm:$0xff]
    %v120 = vld [vmem:[#allocation6 + $0xc0] sm:$0xff]
    %v121 = vld [vmem:[#allocation6 + $0xc8] sm:$0xff]
    %v122 = vld [vmem:[#allocation6 + $0xd0] sm:$0xff]
    %v123 = vld [vmem:[#allocation6 + $0xd8] sm:$0xff]
    %v124 = vld [vmem:[#allocation6 + $0xe0] sm:$0xff]
    %v125 = vld [vmem:[#allocation6 + $0xe8] sm:$0xff]
    %v126 = vld [vmem:[#allocation6 + $0xf0] sm:$0xff]
    %v127 = vld [vmem:[#allocation6 + $0xf8] sm:$0xff]
    %v128 = vld [vmem:[#allocation8] sm:$0xff]
    %v129 = vld [vmem:[#allocation8 + $0x8] sm:$0xff]
    %v130 = vld [vmem:[#allocation8 + $0x10] sm:$0xff]
    %v131 = vld [vmem:[#allocation8 + $0x18] sm:$0xff]
    %v132 = vld [vmem:[#allocation8 + $0x20] sm:$0xff]
    %v133 = vld [vmem:[#allocation8 + $0x28] sm:$0xff]
    %v134 = vld [vmem:[#allocation8 + $0x30] sm:$0xff]
    %v135 = vld [vmem:[#allocation8 + $0x38] sm:$0xff]
    %v136 = vld [vmem:[#allocation8 + $0x40] sm:$0xff]
    %v137 = vld [vmem:[#allocation8 + $0x48] sm:$0xff]
    %v138 = vld [vmem:[#allocation8 + $0x50] sm:$0xff]
    %v139 = vld [vmem:[#allocation8 + $0x58] sm:$0xff]
    %v140 = vld [vmem:[#allocation8 + $0x60] sm:$0xff]
    %v141 = vld [vmem:[#allocation8 + $0x68] sm:$0xff]
    %v142 = vld [vmem:[#allocation8 + $0x70] sm:$0xff]
    %v143 = vld [vmem:[#allocation8 + $0x78] sm:$0xff]
    %v144 = vld [vmem:[#allocation8 + $0x80] sm:$0xff]
    %v145 = vld [vmem:[#allocation8 + $0x88] sm:$0xff]
    %v146 = vld [vmem:[#allocation8 + $0x90] sm:$0xff]
    %v147 = vld [vmem:[#allocation8 + $0x98] sm:$0xff]
    %v148 = vld [vmem:[#allocation8 + $0xa0] sm:$0xff]
    %v149 = vld [vmem:[#allocation8 + $0xa8] sm:$0xff]
    %v150 = vld [vmem:[#allocation8 + $0xb0] sm:$0xff]
    %v151 = vld [vmem:[#allocation8 + $0xb8] sm:$0xff]
    %v152 = vld [vmem:[#allocation8 + $0xc0] sm:$0xff]
    %v153 = vld [vmem:[#allocation8 + $0xc8] sm:$0xff]
    %v154 = vld [vmem:[#allocation8 + $0xd0] sm:$0xff]
    %v155 = vld [vmem:[#allocation8 + $0xd8] sm:$0xff]
    %v156 = vld [vmem:[#allocation8 + $0xe0] sm:$0xff]
    %v157 = vld [vmem:[#allocation8 + $0xe8] sm:$0xff]
    %v158 = vld [vmem:[#allocation8 + $0xf0] sm:$0xff]
    %v159 = vld [vmem:[#allocation8 + $0xf8] sm:$0xff]
    %v160 = vld [vmem:[%s2] sm:$0x1]
    %v161 = vld [vmem:[%s4] sm:$0x1]
    loop: start=0, step=1, limit=8
    $region50: #{tpu_custom_call.1} parent=1 // loop_pre_header
      _
    $region51: #{tpu_custom_call.1} parent=1 // loop_header
      %s163 = sphi 0, %s167
      %p164 = scmp.ge.s32.totalorder %s163, 8
    $region52: #{tpu_custom_call.1} parent=1 // loop_header_branch
      %166 = sbr.rel (%p164) target = $region56
    $region53: #{tpu_custom_call.1} parent=1 // loop_body
      %s168 = smul.u32 %s163, 8
      %s169 = scalar_lea.vmem [#allocation3], %s168
      %v170 = vld [vmem:[%s169] sm:$0xff]
      %v171 = vld [vmem:[#allocation2] sm:$0xff]
      %v173 = vperm.slane %v160, 0
      %175 = vmatpush.msra.mxu0 %v111
      %176 = vmatpush.msra.mxu0 %v110
      %177 = vmatpush.msra.mxu0 %v109
      %178 = vmatpush.msra.mxu0 %v108
      %179 = vmatpush.msra.mxu0 %v107
      %180 = vmatpush.msra.mxu0 %v106
      %181 = vmatpush.msra.mxu0 %v105
      %182 = vmatpush.msra.mxu0 %v104
      %183 = vmatpush.msra.mxu0 %v103
      %184 = vmatpush.msra.mxu0 %v102
      %185 = vmatpush.msra.mxu0 %v101
      %186 = vmatpush.msra.mxu0 %v100
      %187 = vmatpush.msra.mxu0 %v99
      %188 = vmatpush.msra.mxu0 %v98
      %189 = vmatpush.msra.mxu0 %v97
      %190 = vmatpush.msra.mxu0 %v96
      %191 = vmatmul.f32.gmra.mxu0 %v170
      %v192 = vpop.f32.mrf.mxu0
      %v193 = vadd.f32 %v173, %v192
      %194 = vdwg.mxu0
      %195 = vmatpush.msra.mxu0 %v127
      %196 = vmatpush.msra.mxu0 %v126
      %197 = vmatpush.msra.mxu0 %v125
      %198 = vmatpush.msra.mxu0 %v124
      %199 = vmatpush.msra.mxu0 %v123
      %200 = vmatpush.msra.mxu0 %v122
      %201 = vmatpush.msra.mxu0 %v121
      %202 = vmatpush.msra.mxu0 %v120
      %203 = vmatpush.msra.mxu0 %v119
      %204 = vmatpush.msra.mxu0 %v118
      %205 = vmatpush.msra.mxu0 %v117
      %206 = vmatpush.msra.mxu0 %v116
      %207 = vmatpush.msra.mxu0 %v115
      %208 = vmatpush.msra.mxu0 %v114
      %209 = vmatpush.msra.mxu0 %v113
      %210 = vmatpush.msra.mxu0 %v112
      %211 = vmatmul.f32.gmra.mxu0 %v171
      %v212 = vpop.f32.mrf.mxu0
      %v213 = vadd.f32 %v193, %v212
      %214 = vdwg.mxu0
      %v215 = vtanh.pop %v213
      %216 = vst [vmem:[#allocation2] sm:$0xff] %v215
      %s217 = scalar_lea.vmem [#allocation2], 8
      %v218 = vld [vmem:[%s217] sm:$0xff]
      %v220 = vperm.slane %v161, 0
      %222 = vmatpush.msra.mxu0 %v143
      %223 = vmatpush.msra.mxu0 %v142
      %224 = vmatpush.msra.mxu0 %v141
      %225 = vmatpush.msra.mxu0 %v140
      %226 = vmatpush.msra.mxu0 %v139
      %227 = vmatpush.msra.mxu0 %v138
      %228 = vmatpush.msra.mxu0 %v137
      %229 = vmatpush.msra.mxu0 %v136
      %230 = vmatpush.msra.mxu0 %v135
      %231 = vmatpush.msra.mxu0 %v134
      %232 = vmatpush.msra.mxu0 %v133
      %233 = vmatpush.msra.mxu0 %v132
      %234 = vmatpush.msra.mxu0 %v131
      %235 = vmatpush.msra.mxu0 %v130
      %236 = vmatpush.msra.mxu0 %v129
      %237 = vmatpush.msra.mxu0 %v128
      %238 = vmatmul.f32.gmra.mxu0 %v215
      %v239 = vpop.f32.mrf.mxu0
      %v240 = vadd.f32 %v220, %v239
      %241 = vdwg.mxu0
      %242 = vmatpush.msra.mxu0 %v159
      %243 = vmatpush.msra.mxu0 %v158
      %244 = vmatpush.msra.mxu0 %v157
      %245 = vmatpush.msra.mxu0 %v156
      %246 = vmatpush.msra.mxu0 %v155
      %247 = vmatpush.msra.mxu0 %v154
      %248 = vmatpush.msra.mxu0 %v153
      %249 = vmatpush.msra.mxu0 %v152
      %250 = vmatpush.msra.mxu0 %v151
      %251 = vmatpush.msra.mxu0 %v150
      %252 = vmatpush.msra.mxu0 %v149
      %253 = vmatpush.msra.mxu0 %v148
      %254 = vmatpush.msra.mxu0 %v147
      %255 = vmatpush.msra.mxu0 %v146
      %256 = vmatpush.msra.mxu0 %v145
      %257 = vmatpush.msra.mxu0 %v144
      %258 = vmatmul.f32.gmra.mxu0 %v218
      %v259 = vpop.f32.mrf.mxu0
      %v260 = vadd.f32 %v240, %v259
      %261 = vdwg.mxu0
      %v262 = vtanh.pop %v260
      %263 = vst [vmem:[%s217] sm:$0xff] %v262
    $region54: #{tpu_custom_call.1} parent=1 // loop_footer
      %s167 = sadd.s32 1, %s163
    $region55: #{tpu_custom_call.1} parent=1 // loop_footer_branch
      %162 = sbr.rel target = $region51
    $region56: #{tpu_custom_call.1} parent=1 // loop_exit
      _
    // Predicated region
    $region57: #{tpu_custom_call.1} parent=1 // pred_check
      %p264 = pneg %p90
    $region58: #{tpu_custom_call.1} parent=1 // pred_check_branch
      %266 = sbr.rel (%p264) target = $region60
    $region59: #{tpu_custom_call.1} parent=1 // pred_region
      %v267 = vld [vmem:[#allocation9] sm:$0xff]
      %v268 = vld [vmem:[#allocation9 + $0x8] sm:$0xff]
      %v269 = vld [vmem:[#allocation9 + $0x10] sm:$0xff]
      %v270 = vld [vmem:[#allocation9 + $0x18] sm:$0xff]
      %v271 = vld [vmem:[#allocation9 + $0x20] sm:$0xff]
      %v272 = vld [vmem:[#allocation9 + $0x28] sm:$0xff]
      %v273 = vld [vmem:[#allocation9 + $0x30] sm:$0xff]
      %v274 = vld [vmem:[#allocation9 + $0x38] sm:$0xff]
      %v275 = vld [vmem:[#allocation9 + $0x40] sm:$0xff]
      %v276 = vld [vmem:[#allocation9 + $0x48] sm:$0xff]
      %v277 = vld [vmem:[#allocation9 + $0x50] sm:$0xff]
      %v278 = vld [vmem:[#allocation9 + $0x58] sm:$0xff]
      %v279 = vld [vmem:[#allocation9 + $0x60] sm:$0xff]
      %v280 = vld [vmem:[#allocation9 + $0x68] sm:$0xff]
      %v281 = vld [vmem:[#allocation9 + $0x70] sm:$0xff]
      %v282 = vld [vmem:[#allocation9 + $0x78] sm:$0xff]
      %v283 = vld [vmem:[%s6] sm:$0x1]
      %s284 = scalar_lea.vmem [#allocation2], 8
      %v285 = vld [vmem:[%s284] sm:$0xff]
      %v287 = vperm.slane %v283, 0
      %289 = vmatpush.msra.mxu0 %v282
      %290 = vmatpush.msra.mxu0 %v281
      %291 = vmatpush.msra.mxu0 %v280
      %292 = vmatpush.msra.mxu0 %v279
      %293 = vmatpush.msra.mxu0 %v278
      %294 = vmatpush.msra.mxu0 %v277
      %295 = vmatpush.msra.mxu0 %v276
      %296 = vmatpush.msra.mxu0 %v275
      %297 = vmatpush.msra.mxu0 %v274
      %298 = vmatpush.msra.mxu0 %v273
      %299 = vmatpush.msra.mxu0 %v272
      %300 = vmatpush.msra.mxu0 %v271
      %301 = vmatpush.msra.mxu0 %v270
      %302 = vmatpush.msra.mxu0 %v269
      %303 = vmatpush.msra.mxu0 %v268
      %304 = vmatpush.msra.mxu0 %v267
      %305 = vmatmul.f32.gmra.mxu0 %v285
      %v306 = vpop.f32.mrf.mxu0
      %v307 = vadd.f32 %v287, %v306
      %308 = vdwg.mxu0
      %309 = vst [vmem:[#allocation11] sm:$0xff] %v307
    $region60: #{tpu_custom_call.1} parent=1 // pred_fallthru
      _
    // Predicated region
    $region61: #{tpu_custom_call.1} parent=1 // pred_check
      _
    $region62: #{tpu_custom_call.1} parent=1 // pred_check_branch
      %311 = sbr.rel (0) target = $region64
    $region63: #{tpu_custom_call.1} parent=1 // pred_region
      %313 = vsyncadd [#allocation5], 0
      %s315 = sshll.u32 [#allocation11], 4
      %s316 = int_to_ptr.vmem [resolvable:$true] %s315
      %s317 = sshll.u32 %s7, 4
      %s318 = int_to_ptr.hbm [resolvable:$true] %s317
      %320 = dma.vmem_to_hbm [thread:$0]  %s316, 128, %s318, [#allocation5]
    $region64: #{tpu_custom_call.1} parent=1 // pred_fallthru
      _
    // Predicated region
    $region65: #{tpu_custom_call.1} parent=1 // pred_check
      _
    $region66: #{tpu_custom_call.1} parent=1 // pred_check_branch
      %322 = sbr.rel (0) target = $region68
    $region67: #{tpu_custom_call.1} parent=1 // pred_region
      %324 = dma.done [#allocation5], 128
    $region68: #{tpu_custom_call.1} parent=1 // pred_fallthru
      _
    %325 = vsyncpa [#allocation4], 1
    %326 = vsyncpa [#allocation7], 1
    %327 = vsyncpa [#allocation10], 1
    %328 = vsyncpa [#allocation5], 1

</llo_original>
